<compile_context>
chip_gen: v6e
topology: v6e:2x2x1
jax: 0.10.0
libtpu: 0.0.40
codegen_flags: <defaults>
</compile_context>

<pallas_src>
import functools

import jax
import jax.numpy as jnp
from jax import lax
from jax.experimental import pallas as pl
from jax.experimental.pallas import tpu as pltpu

EPS = 1e-8  # torch cosine_similarity default eps


def _round_up(x, m):
    return ((x + m - 1) // m) * m


def _pick_batch_tile(b, d, itemsize, *, max_tile=1024, input_budget_bytes=24 << 20):
    """Largest multiple-of-8 row tile whose double-buffered feature DMAs fit budget."""
    # Per-step VMEM for features: 2 inputs x 2 pipeline buffers x tile x D x itemsize.
    per_row = 4 * d * itemsize
    tile = input_budget_bytes // max(per_row, 1)
    tile = min(tile, max_tile, _round_up(b, 8))
    tile = max(8, (tile // 8) * 8)
    return int(tile)


def _cos_mse_kernel(f1_ref, f2_ref, lab_ref, out_ref, *,
                    batch_tile, total_b, inv_b, labels_resident, mask_tail):
    i = pl.program_id(0)

    @pl.when(i == 0)
    def _():
        out_ref[...] = jnp.zeros_like(out_ref)

    f1 = f1_ref[...].astype(jnp.float32)
    f2 = f2_ref[...].astype(jnp.float32)

    if labels_resident:
        # Labels live resident in VMEM; slice this tile's rows out of them.
        row0 = pl.multiple_of(i * batch_tile, batch_tile)
        lab = lab_ref[pl.ds(row0, batch_tile), :]
    else:
        lab = lab_ref[...]
    lab = lab.astype(jnp.float32)

    # Row-wise cosine similarity (reduction over the feature/lane axis).
    dot = jnp.sum(f1 * f2, axis=-1, keepdims=True)            # (TB, 1)
    n1sq = jnp.sum(f1 * f1, axis=-1, keepdims=True)           # (TB, 1)
    n2sq = jnp.sum(f2 * f2, axis=-1, keepdims=True)           # (TB, 1)
    # 1/max(||x||, eps) == rsqrt(max(||x||^2, eps^2)); rsqrt goes to the EUP slot.
    inv_n1 = lax.rsqrt(jnp.maximum(n1sq, EPS * EPS))
    inv_n2 = lax.rsqrt(jnp.maximum(n2sq, EPS * EPS))
    cos = dot * inv_n1 * inv_n2                                # (TB, 1)

    err = cos - lab
    if mask_tail:
        rows = i * batch_tile + lax.broadcasted_iota(jnp.int32, (batch_tile, 1), 0)
        err = jnp.where(rows < total_b, err, 0.0)

    # Accumulate squared error directly into the resident (1,1) output block.
    out_ref[...] += jnp.sum(err * err, keepdims=True)

    @pl.when(i == pl.num_programs(0) - 1)
    def _():
        out_ref[...] = out_ref[...] * jnp.float32(inv_b)


def cosine_similarity_loss(feat_1, feat_2, labels, *, batch_tile=None):
    """feat_1, feat_2: (B, D); labels: any shape with B elements. Returns f32 scalar."""
    B, D = feat_1.shape
    assert feat_2.shape == (B, D)

    itemsize = jnp.dtype(feat_1.dtype).itemsize
    if batch_tile is None:
        batch_tile = _pick_batch_tile(B, D, itemsize)
    batch_tile = max(8, min(int(batch_tile), _round_up(B, 8)))
    batch_tile = (batch_tile // 8) * 8

    num_tiles = int(pl.cdiv(B, batch_tile))
    padded_b = num_tiles * batch_tile

    # Labels are tiny: pad them to padded_b rows (zero-padded) so every label
    # slice is in bounds. Features are NOT padded; the ragged last feature
    # block is masked inside the kernel.
    labels2d = labels.reshape(B, 1).astype(jnp.float32)
    if padded_b != B:
        labels2d = jnp.pad(labels2d, ((0, padded_b - B), (0, 0)))

    # A (N, 1) f32 VMEM buffer lane-pads to ~512 B/row; keep labels resident
    # only while that stays small, otherwise stream them per tile.
    labels_resident = padded_b * 512 <= (4 << 20)
    if labels_resident:
        lab_spec = pl.BlockSpec((padded_b, 1), lambda i: (0, 0))
        labels_vmem = padded_b * 512
    else:
        lab_spec = pl.BlockSpec((batch_tile, 1), lambda i: (i, 0))
        labels_vmem = 2 * batch_tile * 512

    # Explicit VMEM budget with headroom, capped well under v7x's 64 MiB.
    vmem_need = 4 * batch_tile * D * itemsize + labels_vmem + (1 << 16)
    vmem_limit = int(min(max(vmem_need + (4 << 20), 32 << 20), 48 << 20))

    kernel = functools.partial(
        _cos_mse_kernel,
        batch_tile=batch_tile,
        total_b=B,
        inv_b=1.0 / B,
        labels_resident=labels_resident,
        mask_tail=(padded_b != B),
    )

    out = pl.pallas_call(
        kernel,
        out_shape=jax.ShapeDtypeStruct((1, 1), jnp.float32),
        grid_spec=pltpu.PrefetchScalarGridSpec(
            num_scalar_prefetch=0,
            grid=(num_tiles,),
            in_specs=[
                pl.BlockSpec((batch_tile, D), lambda i: (i, 0)),
                pl.BlockSpec((batch_tile, D), lambda i: (i, 0)),
                lab_spec,
            ],
            out_specs=pl.BlockSpec((1, 1), lambda i: (0, 0)),
        ),
        compiler_params=pltpu.CompilerParams(
            dimension_semantics=("arbitrary",),  # resident accumulator across batch tiles
            vmem_limit_bytes=vmem_limit,
        ),
    )(feat_1, feat_2, labels2d)
    return out.reshape(())


def _reference(feat_1, feat_2, labels):
    f1 = feat_1.astype(jnp.float32)
    f2 = feat_2.astype(jnp.float32)
    dot = jnp.sum(f1 * f2, axis=-1)
    n1 = jnp.sqrt(jnp.sum(f1 * f1, axis=-1))
    n2 = jnp.sqrt(jnp.sum(f2 * f2, axis=-1))
    cos = dot / (jnp.maximum(n1, EPS) * jnp.maximum(n2, EPS))
    err = cos - labels.reshape(-1).astype(jnp.float32)
    return jnp.mean(err * err)


if __name__ == "__main__":
    key = jax.random.PRNGKey(0)
    k1, k2, k3 = jax.random.split(key, 3)

    # Case 1: small, divisible batch (B=16 embedding pairs, hidden=32).
    B, D = 16, 32
    feat_1 = jax.random.normal(k1, (B, D), dtype=jnp.float32)
    feat_2 = jax.random.normal(k2, (B, D), dtype=jnp.float32)
    labels = jax.random.uniform(k3, (B,), dtype=jnp.float32)  # float similarity targets

    loss = jax.block_until_ready(cosine_similarity_loss(feat_1, feat_2, labels))
    ref = jax.block_until_ready(_reference(feat_1, feat_2, labels))
    assert jnp.allclose(loss, ref, rtol=1e-5, atol=1e-6), (loss, ref)

    # Case 2: non-divisible batch (exercises multi-tile accumulation + masked tail).
    B2 = 20
    f1b = jax.random.normal(jax.random.PRNGKey(1), (B2, D), dtype=jnp.float32)
    f2b = jax.random.normal(jax.random.PRNGKey(2), (B2, D), dtype=jnp.float32)
    lbb = jax.random.uniform(jax.random.PRNGKey(3), (B2,), dtype=jnp.float32)

    loss2 = jax.block_until_ready(cosine_similarity_loss(f1b, f2b, lbb, batch_tile=8))
    ref2 = jax.block_until_ready(_reference(f1b, f2b, lbb))
    assert jnp.allclose(loss2, ref2, rtol=1e-5, atol=1e-6), (loss2, ref2)

    print("KERNEL_OK")
</pallas_src>

<mosaic_0001>
module attributes {stable_mosaic.version = 11 : i64} {
  func.func @_cos_mse_kernel(%arg0: i32, %arg1: memref<16x32xf32, #tpu.memory_space<vmem>>, %arg2: memref<16x32xf32, #tpu.memory_space<vmem>>, %arg3: memref<16x1xf32, #tpu.memory_space<vmem>>, %arg4: memref<1x1xf32, #tpu.memory_space<vmem>>) attributes {dimension_semantics = [#tpu.dimension_semantics<arbitrary>], iteration_bounds = array<i64: 1>, scalar_prefetch = 0 : i64, scratch_operands = 0 : i64, tpu.core_type = #tpu.core_type<tc>, window_params = [{transform_indices = @transform_0, window_bounds = array<i64: 16, 32>}, {transform_indices = @transform_1, window_bounds = array<i64: 16, 32>}, {pipeline_mode = #tpu.pipeline_mode<synchronous>, transform_indices = @transform_2, window_bounds = array<i64: 16, 1>}, {pipeline_mode = #tpu.pipeline_mode<synchronous>, transform_indices = @transform_3, window_bounds = array<i64: 1, 1>}]} {
    %c0_i32 = arith.constant 0 : i32
    %0 = arith.cmpi eq, %arg0, %c0_i32 : i32
    %1 = arith.extui %0 : i1 to i32
    %c0_i32_0 = arith.constant 0 : i32
    %2 = arith.cmpi ne, %1, %c0_i32_0 : i32
    scf.if %2 {
      %cst_16 = arith.constant 0.000000e+00 : f32
      %39 = vector.broadcast %cst_16 : f32 to vector<1x1xf32>
      %c0_17 = arith.constant 0 : index
      %c0_18 = arith.constant 0 : index
      %40 = vector.load %arg4[%c0_17, %c0_18] : memref<1x1xf32, #tpu.memory_space<vmem>>, vector<1x1xf32>
      tpu.vector_store %arg4[%c0_17, %c0_18], %39 {strides = array<i32>} : memref<1x1xf32, #tpu.memory_space<vmem>>, vector<1x1xf32>,
    } else {
    }
    %c0 = arith.constant 0 : index
    %c0_1 = arith.constant 0 : index
    %3 = vector.load %arg1[%c0, %c0_1] : memref<16x32xf32, #tpu.memory_space<vmem>>, vector<16x32xf32>
    %c0_2 = arith.constant 0 : index
    %c0_3 = arith.constant 0 : index
    %4 = vector.load %arg2[%c0_2, %c0_3] : memref<16x32xf32, #tpu.memory_space<vmem>>, vector<16x32xf32>
    %c16_i32 = arith.constant 16 : i32
    %5 = arith.muli %arg0, %c16_i32 : i32
    %6 = tpu.assume_multiple %5, 16 : i32
    %7 = arith.index_cast %6 : i32 to index
    %c0_4 = arith.constant 0 : index
    %8 = vector.load %arg3[%7, %c0_4] : memref<16x1xf32, #tpu.memory_space<vmem>>, vector<16x1xf32>
    %9 = arith.mulf %3, %4 : vector<16x32xf32>
    %cst = arith.constant dense<0.000000e+00> : vector<16xf32>
    %10 = vector.multi_reduction <add>, %9, %cst [1] : vector<16x32xf32> to vector<16xf32>
    %11 = vector.shape_cast %10 : vector<16xf32> to vector<16x1xf32>
    %12 = arith.mulf %3, %3 : vector<16x32xf32>
    %cst_5 = arith.constant dense<0.000000e+00> : vector<16xf32>
    %13 = vector.multi_reduction <add>, %12, %cst_5 [1] : vector<16x32xf32> to vector<16xf32>
    %14 = vector.shape_cast %13 : vector<16xf32> to vector<16x1xf32>
    %15 = arith.mulf %4, %4 : vector<16x32xf32>
    %cst_6 = arith.constant dense<0.000000e+00> : vector<16xf32>
    %16 = vector.multi_reduction <add>, %15, %cst_6 [1] : vector<16x32xf32> to vector<16xf32>
    %17 = vector.shape_cast %16 : vector<16xf32> to vector<16x1xf32>
    %cst_7 = arith.constant 1.000000e-16 : f32
    %18 = vector.broadcast %cst_7 : f32 to vector<16x1xf32>
    %19 = arith.maximumf %14, %18 : vector<16x1xf32>
    %20 = math.rsqrt %19 : vector<16x1xf32>
    %cst_8 = arith.constant 1.000000e-16 : f32
    %21 = vector.broadcast %cst_8 : f32 to vector<16x1xf32>
    %22 = arith.maximumf %17, %21 : vector<16x1xf32>
    %23 = math.rsqrt %22 : vector<16x1xf32>
    %24 = arith.mulf %11, %20 : vector<16x1xf32>
    %25 = arith.mulf %24, %23 : vector<16x1xf32>
    %26 = arith.subf %25, %8 : vector<16x1xf32>
    %c0_9 = arith.constant 0 : index
    %c0_10 = arith.constant 0 : index
    %27 = vector.load %arg4[%c0_9, %c0_10] : memref<1x1xf32, #tpu.memory_space<vmem>>, vector<1x1xf32>
    %28 = arith.mulf %26, %26 : vector<16x1xf32>
    %29 = vector.shape_cast %28 : vector<16x1xf32> to vector<1x16x1xf32>
    %cst_11 = arith.constant dense<0.000000e+00> : vector<1xf32>
    %30 = vector.multi_reduction <add>, %29, %cst_11 [1, 2] : vector<1x16x1xf32> to vector<1xf32>
    %31 = vector.shape_cast %30 : vector<1xf32> to vector<1x1x1xf32>
    %32 = vector.extract %31[0, 0, 0] : f32 from vector<1x1x1xf32>
    %33 = vector.broadcast %32 : f32 to vector<1x1xf32>
    %34 = arith.addf %27, %33 : vector<1x1xf32>
    %c0_12 = arith.constant 0 : index
    %c0_13 = arith.constant 0 : index
    %35 = vector.load %arg4[%c0_12, %c0_13] : memref<1x1xf32, #tpu.memory_space<vmem>>, vector<1x1xf32>
    tpu.vector_store %arg4[%c0_12, %c0_13], %34 {strides = array<i32>} : memref<1x1xf32, #tpu.memory_space<vmem>>, vector<1x1xf32>,
    %c0_i32_14 = arith.constant 0 : i32
    %36 = arith.cmpi eq, %arg0, %c0_i32_14 : i32
    %37 = arith.extui %36 : i1 to i32
    %c0_i32_15 = arith.constant 0 : i32
    %38 = arith.cmpi ne, %37, %c0_i32_15 : i32
    scf.if %38 {
      %c0_16 = arith.constant 0 : index
      %c0_17 = arith.constant 0 : index
      %39 = vector.load %arg4[%c0_16, %c0_17] : memref<1x1xf32, #tpu.memory_space<vmem>>, vector<1x1xf32>
      %cst_18 = arith.constant 6.250000e-02 : f32
      %40 = vector.broadcast %cst_18 : f32 to vector<1x1xf32>
      %41 = arith.mulf %39, %40 : vector<1x1xf32>
      %c0_19 = arith.constant 0 : index
      %c0_20 = arith.constant 0 : index
      %42 = vector.load %arg4[%c0_19, %c0_20] : memref<1x1xf32, #tpu.memory_space<vmem>>, vector<1x1xf32>
      tpu.vector_store %arg4[%c0_19, %c0_20], %41 {strides = array<i32>} : memref<1x1xf32, #tpu.memory_space<vmem>>, vector<1x1xf32>,
    } else {
    }
    return
  }
  func.func @transform_0(%arg0: i32) -> (i32, i32) {
    %c0_i32 = arith.constant 0 : i32
    %c0_i32_0 = arith.constant 0 : i32
    return %arg0, %c0_i32 : i32, i32
  }
  func.func @transform_1(%arg0: i32) -> (i32, i32) {
    %c0_i32 = arith.constant 0 : i32
    %c0_i32_0 = arith.constant 0 : i32
    return %arg0, %c0_i32 : i32, i32
  }
  func.func @transform_2(%arg0: i32) -> (i32, i32) {
    %c0_i32 = arith.constant 0 : i32
    %c0_i32_0 = arith.constant 0 : i32
    %c0_i32_1 = arith.constant 0 : i32
    return %c0_i32, %c0_i32_0 : i32, i32
  }
  func.func @transform_3(%arg0: i32) -> (i32, i32) {
    %c0_i32 = arith.constant 0 : i32
    %c0_i32_0 = arith.constant 0 : i32
    %c0_i32_1 = arith.constant 0 : i32
    return %c0_i32, %c0_i32_0 : i32, i32
  }
}

</mosaic_0001>

<llo_original>
// kernel: tpu_custom_call.1
$region0: #{tpu_custom_call.1}
  #allocation0 [shape = 'u32[]', space=smem, size = 0x4, offset = 0x4, fixed_abs, tag = 'smem constant byte address 0x4 - core index']
  #allocation1 [shape = 'u32[144,128]{1,0:T(1,128)}', space=vmem, size = 0x12000, scoped, tag = 'internal scratch']
  %s0 = inlined_call_operand.vmem [shape: f32[16,32], index: 0, kind: input, shape index: {}]
  %s1 = inlined_call_operand.hbm [shape: f32[16,32], index: 1, kind: input, shape index: {}]
  %s2 = inlined_call_operand.vmem [shape: f32[16,1], index: 2, kind: input, shape index: {}]
  %s3 = inlined_call_operand.hbm [shape: f32[1,1], index: 3, kind: output, shape index: {}]
  %s4 = sld [smem:[#allocation0]]
  $region34: #{tpu_custom_call.1} parent=0
    _
  %s6 = ssub.s32 1, %s4
  %s7 = scalar_select 0, %s6, %s4
  $region1: #{tpu_custom_call.1} parent=0
    #allocation2 [shape = 'u8[8192]{0}', space=vmem, size = 0x2000, scoped, tag = 'input window, operand 1, single buffered']
    #allocation3 [shape = 's32[1]{0}', space=sflag, size = 0x4, scoped, tag = 'scoped memory for tpu_custom_call.1']
    #allocation4 [shape = 's32[1]{0}', space=sflag, size = 0x4, scoped, tag = 'scoped memory for tpu_custom_call.1']
    #allocation5 [shape = 'u8[512]{0}', space=vmem, size = 0x400, scoped, tag = 'output window, operand 0, single buffered']
    %8 = vsyncpa [#allocation3], 0
    %9 = vsyncpa [#allocation4], 0
    // Predicated region
    $region2: #{tpu_custom_call.1} parent=1 // pred_check
      _
    $region3: #{tpu_custom_call.1} parent=1 // pred_check_branch
      %11 = sbr.rel (0) target = $region5
    $region4: #{tpu_custom_call.1} parent=1 // pred_region
      _
    $region5: #{tpu_custom_call.1} parent=1 // pred_fallthru
      _
    // Predicated region
    $region6: #{tpu_custom_call.1} parent=1 // pred_check
      _
    $region7: #{tpu_custom_call.1} parent=1 // pred_check_branch
      %13 = sbr.rel (0) target = $region9
    $region8: #{tpu_custom_call.1} parent=1 // pred_region
      %s15 = ssub.s32 256, 256
      %16 = vsyncadd [#allocation3], %s15
      %s17 = sshll.u32 [#allocation2], 4
      %s18 = int_to_ptr.vmem [resolvable:$true] %s17
      %23 = dma.hbm_to_vmem [thread:$0]  %s1, 256, %s18, [#allocation3], 128, 128, 8
    $region9: #{tpu_custom_call.1} parent=1 // pred_fallthru
      _
    // Predicated region
    $region10: #{tpu_custom_call.1} parent=1 // pred_check
      _
    $region11: #{tpu_custom_call.1} parent=1 // pred_check_branch
      %25 = sbr.rel (0) target = $region13
    $region12: #{tpu_custom_call.1} parent=1 // pred_region
      _
    $region13: #{tpu_custom_call.1} parent=1 // pred_fallthru
      _
    // Predicated region
    $region14: #{tpu_custom_call.1} parent=1 // pred_check
      _
    $region15: #{tpu_custom_call.1} parent=1 // pred_check_branch
      %27 = sbr.rel (0) target = $region17
    $region16: #{tpu_custom_call.1} parent=1 // pred_region
      %28 = dma.done [#allocation3], 256
    $region17: #{tpu_custom_call.1} parent=1 // pred_fallthru
      _
    %p29 = scmp.eq.s32.totalorder 0, 0
    // Predicated region
    $region18: #{tpu_custom_call.1} parent=1 // pred_check
      %p30 = pneg %p29
    $region19: #{tpu_custom_call.1} parent=1 // pred_check_branch
      %32 = sbr.rel (%p30) target = $region21
    $region20: #{tpu_custom_call.1} parent=1 // pred_region
      %vm33 = vcmask 0
      %34 = vst.msk [vmem:[#allocation5] sm:$0x1] %vm33, 0.0
    $region21: #{tpu_custom_call.1} parent=1 // pred_fallthru
      _
    %v35 = vld [vmem:[%s0] sm:$0xff]
    %v36 = vld [vmem:[%s0 + $0x8] sm:$0xff]
    %v37 = vld [vmem:[#allocation2] sm:$0xff]
    %v38 = vld [vmem:[#allocation2 + $0x8] sm:$0xff]
    %s39 = smul.u32 0, 16
    %s40 = scalar_lea.vmem %s2, %s39
    %v41 = vld [vmem:[%s40] sm:$0xff]
    %v42 = vld [vmem:[%s40 + $0x8] sm:$0xff]
    %v43 = vmul.f32 %v35, %v37
    %v44 = vmul.f32 %v36, %v38
    %vm45 = vcmask 261120
    %v46 = vsel %vm45, %v43, 0.0
    %47 = vadd.xlane.f32.xlu0 %v46
    %v48 = vpop.xlane.xlu0 %47
    %v49 = vsel %vm45, %v44, 0.0
    %50 = vadd.xlane.f32.xlu0 %v49
    %v51 = vpop.xlane.xlu0 %50
    %v52 = vmul.f32 %v35, %v35
    %v53 = vmul.f32 %v36, %v36
    %v54 = vsel %vm45, %v52, 0.0
    %55 = vadd.xlane.f32.xlu0 %v54
    %v56 = vpop.xlane.xlu0 %55
    %v57 = vsel %vm45, %v53, 0.0
    %58 = vadd.xlane.f32.xlu0 %v57
    %v59 = vpop.xlane.xlu0 %58
    %v60 = vmul.f32 %v37, %v37
    %v61 = vmul.f32 %v38, %v38
    %v62 = vsel %vm45, %v60, 0.0
    %63 = vadd.xlane.f32.xlu0 %v62
    %v64 = vpop.xlane.xlu0 %63
    %v65 = vsel %vm45, %v61, 0.0
    %66 = vadd.xlane.f32.xlu0 %v65
    %v67 = vpop.xlane.xlu0 %66
    %v68 = vmax.f32 %v56, 1e-16
    %v69 = vmax.f32 %v59, 1e-16
    %v70 = vrsqrt.pop %v68
    %v71 = vrsqrt.pop %v69
    %v72 = vmax.f32 %v64, 1e-16
    %v73 = vmax.f32 %v67, 1e-16
    %v74 = vrsqrt.pop %v72
    %v75 = vrsqrt.pop %v73
    %v76 = vmul.f32 %v48, %v70
    %v77 = vmul.f32 %v51, %v71
    %v78 = vmul.f32 %v76, %v74
    %v79 = vmul.f32 %v77, %v75
    %v80 = vsub.f32 %v78, %v41
    %v81 = vsub.f32 %v79, %v42
    %v82 = vld [vmem:[#allocation5] sm:$0x1]
    %v83 = vmul.f32 %v80, %v80
    %v84 = vmul.f32 %v81, %v81
    %vm85 = vcmask 7168
    %v86 = vsel %vm85, %v83, 0.0
    %v87 = vsel %vm85, %v84, 0.0
    %v88 = vadd.f32 %v86, %v87
    %89 = vadd.xlane.f32.xlu0 %v88
    %v90 = vpop.xlane.xlu0 %89
    %v91 = vrot.slane %v90, 4
    %v92 = vadd.f32 %v90, %v91
    %v93 = vrot.slane %v92, 2
    %v94 = vadd.f32 %v92, %v93
    %v95 = vrot.slane %v94, 1
    %v96 = vadd.f32 %v94, %v95
    %s97 = vtos %v96
    %v98 = vstv %s97
    %v99 = vadd.f32 %v82, %v98
    %vm100 = vcmask 0
    %101 = vst.msk [vmem:[#allocation5] sm:$0x1] %vm100, %v99
    // Predicated region
    $region22: #{tpu_custom_call.1} parent=1 // pred_check
      %p102 = pneg %p29
    $region23: #{tpu_custom_call.1} parent=1 // pred_check_branch
      %104 = sbr.rel (%p102) target = $region25
    $region24: #{tpu_custom_call.1} parent=1 // pred_region
      %v105 = vld [vmem:[#allocation5] sm:$0x1]
      %v106 = vmul.f32 %v105, 0.0625
      %107 = vst.msk [vmem:[#allocation5] sm:$0x1] %vm100, %v106
    $region25: #{tpu_custom_call.1} parent=1 // pred_fallthru
      _
    // Predicated region
    $region26: #{tpu_custom_call.1} parent=1 // pred_check
      _
    $region27: #{tpu_custom_call.1} parent=1 // pred_check_branch
      %109 = sbr.rel (0) target = $region29
    $region28: #{tpu_custom_call.1} parent=1 // pred_region
      %s111 = ssub.s32 16, 16
      %112 = vsyncadd [#allocation4], %s111
      %s114 = sshll.u32 [#allocation5], 4
      %s115 = int_to_ptr.vmem [resolvable:$true] %s114
      %117 = dma.vmem_to_hbm [thread:$0]  %s115, 16, %s3, [#allocation4]
    $region29: #{tpu_custom_call.1} parent=1 // pred_fallthru
      _
    // Predicated region
    $region30: #{tpu_custom_call.1} parent=1 // pred_check
      _
    $region31: #{tpu_custom_call.1} parent=1 // pred_check_branch
      %119 = sbr.rel (0) target = $region33
    $region32: #{tpu_custom_call.1} parent=1 // pred_region
      %120 = dma.done [#allocation4], 16
    $region33: #{tpu_custom_call.1} parent=1 // pred_fallthru
      _
    %121 = vsyncpa [#allocation3], 1
    %122 = vsyncpa [#allocation4], 1

</llo_original>
